<compile_context>
chip_gen: v7x
topology: tpu7x:2x2x1
jax: 0.10.0
libtpu: 0.0.40
codegen_flags: <defaults>
</compile_context>

<pallas_src>
import jax
import jax.numpy as jnp
from jax.experimental import pallas as pl
from jax.experimental.pallas import tpu as pltpu


def _bitfit_kernel(gw_ref, bias_ref, o_ref):
    # gw_ref:   SMEM, shape (2,)   -> gumbel weights ([0,1] when none given)
    # bias_ref: VMEM, shape (1, W) -> bias laid out along lanes (resident, DMA'd once)
    # o_ref:    VMEM, shape (TR, W)
    eff = (gw_ref[1] * bias_ref[...]).astype(o_ref.dtype)      # (1, W)
    o_ref[...] = jnp.broadcast_to(eff, o_ref.shape)            # write-only broadcast


def bitfit_parallel_forward(hiddens, bias, gumbel_weights=None,
                            *, target_block_bytes=8 * 1024 * 1024):
    """hiddens: (..., H) — only shape/dtype used; bias: (H,); gumbel_weights: None or (2,)."""
    shape = hiddens.shape
    dtype = hiddens.dtype
    H = int(shape[-1])
    R = 1
    for d in shape[:-1]:
        R *= int(d)

    if gumbel_weights is None:
        gw = jnp.array([0.0, 1.0], dtype=jnp.float32)   # equivalent to plain bias add
    else:
        gw = jnp.asarray(gumbel_weights, dtype=jnp.float32).reshape(2)

    bias_f32 = bias.astype(jnp.float32).reshape(H)

    # Degenerate (zero-element) inputs: nothing for the kernel to do.
    if R == 0 or H == 0:
        return jnp.zeros(shape, dtype=dtype)

    # Lane-dense flat layout: if H < 128 but divides 128 and the total element count
    # is a multiple of 128, present a (rows, 128) output slab with the bias tiled
    # along lanes -> unmasked, full-lane stores. Otherwise keep (R, H) (last dim equals
    # the full array dim, which is always a legal block).
    if H < 128 and 128 % H == 0 and (R * H) % 128 == 0 and (R * H) >= 128:
        W = 128
        rows = (R * H) // 128
        bias_row = jnp.tile(bias_f32, 128 // H)[None, :]         # (1, 128)
    else:
        W = H
        rows = R
        bias_row = bias_f32[None, :]                             # (1, H)

    # Sublane-aligned row tile sized to a few MiB (fits double-buffered in the
    # default 32 MiB scoped VMEM on every generation, incl. v7x's 64 MiB physical).
    itemsize = jnp.dtype(dtype).itemsize
    sub = max(8, 32 // max(itemsize, 1))          # 8 (f32) / 16 (bf16) / 32 (int8)
    bytes_per_row = max(W * itemsize, 1)
    tr = max(sub, (target_block_bytes // bytes_per_row) // sub * sub)
    if tr >= rows:
        tr = rows                                  # full extent is always legal
        grid_rows = 1
    else:
        grid_rows = pl.cdiv(rows, tr)

    flat_out = pl.pallas_call(
        _bitfit_kernel,
        out_shape=jax.ShapeDtypeStruct((rows, W), dtype),
        grid=(grid_rows,),
        in_specs=[
            pl.BlockSpec(memory_space=pltpu.MemorySpace.SMEM),   # gumbel weights (2,)
            pl.BlockSpec((1, W), lambda r: (0, 0)),              # bias row, same block every step
        ],
        out_specs=pl.BlockSpec((tr, W), lambda r: (r, 0)),
        compiler_params=pltpu.CompilerParams(dimension_semantics=("parallel",)),
    )(gw, bias_row)

    return flat_out.reshape(shape)


class BitFitParallelLayer:
    """JAX/Pallas port of the PyTorch BitFitParallelLayer (forward only).
    freeze_arch/finalized_arch are host-side bookkeeping; no kernel needed."""

    def __init__(self, hidden_dim, init_method="zero"):
        self.init_method = init_method
        if init_method == "zero":
            self.BitFit_bias = jnp.zeros((hidden_dim,), dtype=jnp.float32)
        else:
            raise NotImplementedError
        self.hidden_dim = hidden_dim
        self.instantiated = True
        self.retrain_flag = False
        self.binary_choice = 1
        self.fix_weight = None

    def freeze_arch(self, finalized_weight=None, retrain_flag=False):
        self.fix_weight = finalized_weight
        self.retrain_flag = retrain_flag
        if self.fix_weight is not None:
            binary_weight = jnp.asarray(self.fix_weight["binary"])
            self.binary_choice = int(jnp.argmax(binary_weight))
        if self.retrain_flag:
            self.finalized_arch()

    def finalized_arch(self):
        if self.binary_choice == 0:
            self.BitFit_bias = None

    def __call__(self, output, gumbel_weights=None):
        if gumbel_weights is None and self.binary_choice == 0:
            return 0
        if isinstance(output, tuple):
            hiddens = output[0]
        elif isinstance(output, jnp.ndarray):
            hiddens = output
        else:
            raise TypeError
        modified = bitfit_parallel_forward(hiddens, self.BitFit_bias, gumbel_weights)
        if isinstance(output, tuple):
            return (modified,) + output[1:]
        return modified


if __name__ == "__main__":
    key = jax.random.PRNGKey(0)
    B, S, H = 2, 8, 32
    k_x, k_b, k_g = jax.random.split(key, 3)
    x = jax.random.normal(k_x, (B, S, H), dtype=jnp.float32)

    # 1) Module as defined (zero-init bias), no gumbel weights.
    layer = BitFitParallelLayer(hidden_dim=H)
    out = jax.block_until_ready(layer(x))
    ref = jnp.zeros_like(x) + layer.BitFit_bias
    assert out.shape == x.shape and out.dtype == x.dtype
    assert jnp.allclose(out, ref)

    # 2) Actual compute path: nonzero bias + gumbel weights (lane-dense layout path).
    nonzero_bias = jax.random.normal(k_b, (H,), dtype=jnp.float32)
    gumbel = jax.nn.softmax(jax.random.normal(k_g, (2,), dtype=jnp.float32))
    out2 = jax.block_until_ready(bitfit_parallel_forward(x, nonzero_bias, gumbel))
    ref2 = jnp.zeros_like(x) + (gumbel[0] * jnp.zeros_like(nonzero_bias)
                                + gumbel[1] * nonzero_bias)
    assert jnp.allclose(out2, ref2, atol=1e-6)

    # 3) Tuple input path.
    out3 = layer((x, jnp.ones((3,))))
    jax.block_until_ready(out3[0])
    assert jnp.allclose(out3[0], ref) and out3[1].shape == (3,)

    # 4) bf16 output dtype (exercises in-kernel cast + 16-sublane alignment logic).
    x_bf16 = x.astype(jnp.bfloat16)
    out4 = jax.block_until_ready(bitfit_parallel_forward(x_bf16, nonzero_bias, gumbel))
    assert out4.dtype == jnp.bfloat16
    assert jnp.allclose(out4.astype(jnp.float32), ref2, atol=1e-2)

    # 5) Hidden dim >= 128 path (W = H, multi-row-tile grid).
    H2 = 256
    x_big = jax.random.normal(k_x, (4, 16, H2), dtype=jnp.float32)
    bias_big = jax.random.normal(k_b, (H2,), dtype=jnp.float32)
    out5 = jax.block_until_ready(bitfit_parallel_forward(x_big, bias_big, gumbel))
    ref5 = jnp.zeros_like(x_big) + gumbel[1] * bias_big
    assert jnp.allclose(out5, ref5, atol=1e-6)

    # 6) finalized_arch path (binary_choice == 0 -> returns 0, no kernel launch).
    layer2 = BitFitParallelLayer(hidden_dim=H)
    layer2.freeze_arch({"binary": jnp.array([1.0, 0.0])}, retrain_flag=True)
    assert layer2(x) == 0

    print("KERNEL_OK")
</pallas_src>

<mosaic_0001>
module attributes {stable_mosaic.version = 11 : i64} {
  func.func @_bitfit_kernel(%arg0: i32, %arg1: memref<2xf32, #tpu.memory_space<smem>>, %arg2: memref<1x128xf32, #tpu.memory_space<vmem>>, %arg3: memref<4x128xf32, #tpu.memory_space<vmem>>) attributes {dimension_semantics = [#tpu.dimension_semantics<parallel>], iteration_bounds = array<i64: 1>, scalar_prefetch = 0 : i64, scratch_operands = 0 : i64, tpu.core_type = #tpu.core_type<tc>, window_params = [{transform_indices = @transform_0, window_bounds = array<i64: 2>}, {pipeline_mode = #tpu.pipeline_mode<synchronous>, transform_indices = @transform_1, window_bounds = array<i64: 1, 128>}, {transform_indices = @transform_2, window_bounds = array<i64: 4, 128>}]} {
    %c1 = arith.constant 1 : index
    %0 = memref.load %arg1[%c1] : memref<2xf32, #tpu.memory_space<smem>>
    %c0 = arith.constant 0 : index
    %c0_0 = arith.constant 0 : index
    %1 = vector.load %arg2[%c0, %c0_0] : memref<1x128xf32, #tpu.memory_space<vmem>>, vector<1x128xf32>
    %2 = vector.broadcast %0 : f32 to vector<1x128xf32>
    %3 = arith.mulf %2, %1 : vector<1x128xf32>
    %4 = vector.shape_cast %3 : vector<1x128xf32> to vector<1x128xf32>
    %5 = vector.broadcast %4 : vector<1x128xf32> to vector<4x128xf32>
    %c0_1 = arith.constant 0 : index
    %c0_2 = arith.constant 0 : index
    %6 = vector.load %arg3[%c0_1, %c0_2] : memref<4x128xf32, #tpu.memory_space<vmem>>, vector<4x128xf32>
    tpu.vector_store %arg3[%c0_1, %c0_2], %5 {strides = array<i32>} : memref<4x128xf32, #tpu.memory_space<vmem>>, vector<4x128xf32>,
    return
  }
  func.func @transform_0(%arg0: i32) -> i32 {
    %c0_i32 = arith.constant 0 : i32
    %c0_i32_0 = arith.constant 0 : i32
    return %c0_i32 : i32
  }
  func.func @transform_1(%arg0: i32) -> (i32, i32) {
    %c0_i32 = arith.constant 0 : i32
    %c0_i32_0 = arith.constant 0 : i32
    %c0_i32_1 = arith.constant 0 : i32
    return %c0_i32, %c0_i32_0 : i32, i32
  }
  func.func @transform_2(%arg0: i32) -> (i32, i32) {
    %c0_i32 = arith.constant 0 : i32
    %c0_i32_0 = arith.constant 0 : i32
    return %arg0, %c0_i32 : i32, i32
  }
}

</mosaic_0001>

<llo_original>
// kernel: tpu_custom_call.1
$region0: #{tpu_custom_call.1}
  #allocation0 [shape = 'u32[]', space=smem, size = 0x4, offset = 0x4, fixed_abs, tag = 'smem constant byte address 0x4 - core index']
  #allocation1 [shape = 'u32[144,128]{1,0:T(1,128)}', space=vmem, size = 0x12000, scoped, tag = 'internal scratch']
  %s0 = inlined_call_operand.hbm [shape: f32[2], index: 0, kind: input, shape index: {}]
  %s1 = inlined_call_operand.vmem [shape: f32[1,128], index: 1, kind: input, shape index: {}]
  %s2 = inlined_call_operand.hbm [shape: f32[4,128], index: 2, kind: output, shape index: {}]
  %s3 = sld [smem:[#allocation0]]
  $region22: #{tpu_custom_call.1} parent=0
    _
  %s5 = ssub.s32 1, %s3
  %s6 = scalar_select 0, %s5, %s3
  $region1: #{tpu_custom_call.1} parent=0
    #allocation2 [shape = 'u8[512]{0}', space=smem, size = 0x200, scoped, tag = 'input window, operand 0, single buffered']
    #allocation3 [shape = 's32[1]{0}', space=sflag, size = 0x4, scoped, tag = 'scoped memory for tpu_custom_call.1']
    #allocation4 [shape = 's32[1]{0}', space=sflag, size = 0x4, scoped, tag = 'scoped memory for tpu_custom_call.1']
    #allocation5 [shape = 'u8[2048]{0}', space=vmem, size = 0x800, scoped, tag = 'output window, operand 0, single buffered']
    %7 = vsyncpa [#allocation4], 0
    %8 = vsyncpa [#allocation3], 0
    // Predicated region
    $region2: #{tpu_custom_call.1} parent=1 // pred_check
      _
    $region3: #{tpu_custom_call.1} parent=1 // pred_check_branch
      %10 = sbr.rel (0) target = $region5
    $region4: #{tpu_custom_call.1} parent=1 // pred_region
      %s12 = ssub.s32 16, 16
      %13 = vsyncadd [#allocation4], %s12
      %16 = dma.hbm_to_smem %s0, 16, [#allocation2], [#allocation4]
    $region5: #{tpu_custom_call.1} parent=1 // pred_fallthru
      _
    // Predicated region
    $region6: #{tpu_custom_call.1} parent=1 // pred_check
      _
    $region7: #{tpu_custom_call.1} parent=1 // pred_check_branch
      %18 = sbr.rel (0) target = $region9
    $region8: #{tpu_custom_call.1} parent=1 // pred_region
      _
    $region9: #{tpu_custom_call.1} parent=1 // pred_fallthru
      _
    // Predicated region
    $region10: #{tpu_custom_call.1} parent=1 // pred_check
      _
    $region11: #{tpu_custom_call.1} parent=1 // pred_check_branch
      %20 = sbr.rel (0) target = $region13
    $region12: #{tpu_custom_call.1} parent=1 // pred_region
      %21 = dma.done [#allocation4], 16
    $region13: #{tpu_custom_call.1} parent=1 // pred_fallthru
      _
    %22 = sfence
    %s23 = sld [smem:[#allocation2 + $0x1]]
    %v24 = vld [vmem:[%s1] sm:$0x1]
    %v25 = vstv %s23
    %v26 = vmul.f32 %v25, %v24
    %v28 = vlaneseq
    %v29 = vshrl.u32 %v28, 7
    %v30 = vsub.s32 0, %v29
    %v31 = vrot.slane %v26, %v30
    %33 = vst [vmem:[#allocation5] sm:$0xf] %v31
    // Predicated region
    $region14: #{tpu_custom_call.1} parent=1 // pred_check
      _
    $region15: #{tpu_custom_call.1} parent=1 // pred_check_branch
      %35 = sbr.rel (0) target = $region17
    $region16: #{tpu_custom_call.1} parent=1 // pred_region
      %s37 = ssub.s32 64, 64
      %38 = vsyncadd [#allocation3], %s37
      %s40 = sshll.u32 [#allocation5], 4
      %s41 = int_to_ptr.vmem [resolvable:$true] %s40
      %43 = dma.vmem_to_hbm [thread:$0]  %s41, 64, %s2, [#allocation3]
    $region17: #{tpu_custom_call.1} parent=1 // pred_fallthru
      _
    // Predicated region
    $region18: #{tpu_custom_call.1} parent=1 // pred_check
      _
    $region19: #{tpu_custom_call.1} parent=1 // pred_check_branch
      %45 = sbr.rel (0) target = $region21
    $region20: #{tpu_custom_call.1} parent=1 // pred_region
      %46 = dma.done [#allocation3], 64
    $region21: #{tpu_custom_call.1} parent=1 // pred_fallthru
      _
    %47 = vsyncpa [#allocation3], 1
    %48 = vsyncpa [#allocation4], 1

</llo_original>
